<compile_context>
chip_gen: v5e
topology: v5e:2x2
jax: 0.10.0
libtpu: 0.0.40
codegen_flags: <defaults>
</compile_context>

<pallas_src>
import jax
import jax.numpy as jnp
from jax.experimental import pallas as pl
from jax.experimental.pallas import tpu as pltpu


def _round_up(n: int, m: int) -> int:
    return ((n + m - 1) // m) * m


def _loglinear_kernel(x_ref, w_ref, b_ref, o_ref):
    # x_ref: (TB, D) VMEM   w_ref: (1, D) VMEM (resident)   b_ref: (1, 1) SMEM
    # o_ref: (1, TB) VMEM  -- lane-dense row of per-example logits.
    x = x_ref[...]
    w = w_ref[...]
    # Contract w (1, D) against x (TB, D) along D -> (1, TB): the result is
    # accumulated straight into row (lane-dense) layout, avoiding a (TB, 1)
    # column and its masked stores, and avoiding any wrapper-side transpose.
    row = jax.lax.dot_general(
        w, x,
        dimension_numbers=(((1,), (1,)), ((), ())),
        preferred_element_type=jnp.float32,
    )
    o_ref[...] = (row + b_ref[0, 0]).astype(o_ref.dtype)


def loglinear_forward(x, weight, bias, *, block_b: int = 512):
    """Pallas equivalent of nn.Linear(embedding_dim, 1)(x).

    x:      (B, D) float32
    weight: (1, D) float32  (PyTorch nn.Linear layout)
    bias:   (1,)   float32
    returns (B, 1) float32
    """
    B, D = x.shape
    x = x.astype(jnp.float32)
    w = weight.astype(jnp.float32).reshape(1, D)
    b = bias.astype(jnp.float32).reshape(1, 1)

    # Pick the batch tile size:
    #  - keep the double-buffered x window (2 * TB * D * 4B) under ~8 MiB so
    #    it fits comfortably within every generation's scoped VMEM (v7x has
    #    only 64 MiB physical / 32 MiB default scoped);
    #  - multi-tile blocks are multiples of 128 so the (1, TB) output block is
    #    lane-aligned; a single-tile block just matches the (padded) batch.
    vmem_budget = 8 * 1024 * 1024
    tb_cap = max(128, (vmem_budget // (2 * D * 4)) // 128 * 128)
    tb = min(block_b, tb_cap)
    if B <= tb:
        tb = _round_up(B, 8)          # single tile: block == full array
    B_pad = _round_up(B, tb)
    if B_pad != B:
        x = jnp.pad(x, ((0, B_pad - B), (0, 0)))
    num_tiles = B_pad // tb

    out_row = pl.pallas_call(
        _loglinear_kernel,
        out_shape=jax.ShapeDtypeStruct((1, B_pad), jnp.float32),
        grid_spec=pltpu.PrefetchScalarGridSpec(
            num_scalar_prefetch=0,
            grid=(num_tiles,),
            in_specs=[
                # x: one (TB, D) batch tile per grid step (pipelined).
                pl.BlockSpec((tb, D), lambda i: (i, 0)),
                # weight: constant block index -> stays VMEM-resident.
                pl.BlockSpec((1, D), lambda i: (0, 0)),
                # bias: scalar on the SMEM path, no VMEM DMA.
                pl.BlockSpec(memory_space=pltpu.MemorySpace.SMEM),
            ],
            # Lane-dense output row: (1, TB) per tile.
            out_specs=pl.BlockSpec((1, tb), lambda i: (0, i)),
        ),
        compiler_params=pltpu.CompilerParams(
            # Batch tiles are independent -> shard across TensorCores (v7x).
            dimension_semantics=("parallel",),
        ),
    )(x, w, b)

    # (1, B_pad) row -> (B, 1) column, dropping any batch padding.
    return out_row[0, :B].reshape(B, 1)


if __name__ == "__main__":
    # Small, deterministic setup consistent with the module:
    # batch = 8 examples, embedding_dim = 32.
    B, D = 8, 32
    key = jax.random.PRNGKey(0)
    kx, kw, kb = jax.random.split(key, 3)

    x = jax.random.normal(kx, (B, D), dtype=jnp.float32)

    # Deterministic parameter init (same shapes as nn.Linear(D, 1)):
    # uniform(-1/sqrt(D), 1/sqrt(D)), mirroring PyTorch's default init.
    bound = 1.0 / (D ** 0.5)
    weight = jax.random.uniform(kw, (1, D), minval=-bound, maxval=bound,
                                dtype=jnp.float32)
    bias = jax.random.uniform(kb, (1,), minval=-bound, maxval=bound,
                              dtype=jnp.float32)

    out = loglinear_forward(x, weight, bias)
    out = jax.block_until_ready(out)

    # Reference check in plain JAX (x @ W.T + b).
    ref = x @ weight.T + bias
    assert out.shape == (B, 1)
    assert jnp.allclose(out, ref, atol=1e-5, rtol=1e-5)

    print("KERNEL_OK")
</pallas_src>

<mosaic_0001>
module attributes {stable_mosaic.version = 11 : i64} {
  func.func @_loglinear_kernel(%arg0: i32, %arg1: memref<8x32xf32, #tpu.memory_space<vmem>>, %arg2: memref<1x32xf32, #tpu.memory_space<vmem>>, %arg3: memref<1x1xf32, #tpu.memory_space<smem>>, %arg4: memref<1x8xf32, #tpu.memory_space<vmem>>) attributes {dimension_semantics = [#tpu.dimension_semantics<parallel>], iteration_bounds = array<i64: 1>, scalar_prefetch = 0 : i64, scratch_operands = 0 : i64, tpu.core_type = #tpu.core_type<tc>, window_params = [{transform_indices = @transform_0, window_bounds = array<i64: 8, 32>}, {pipeline_mode = #tpu.pipeline_mode<synchronous>, transform_indices = @transform_1, window_bounds = array<i64: 1, 32>}, {transform_indices = @transform_2, window_bounds = array<i64: 1, 1>}, {transform_indices = @transform_3, window_bounds = array<i64: 1, 8>}]} {
    %c0 = arith.constant 0 : index
    %c0_0 = arith.constant 0 : index
    %0 = vector.load %arg1[%c0, %c0_0] : memref<8x32xf32, #tpu.memory_space<vmem>>, vector<8x32xf32>
    %c0_1 = arith.constant 0 : index
    %c0_2 = arith.constant 0 : index
    %1 = vector.load %arg2[%c0_1, %c0_2] : memref<1x32xf32, #tpu.memory_space<vmem>>, vector<1x32xf32>
    %cst = arith.constant dense<0.000000e+00> : vector<1x8xf32>
    %2 = tpu.matmul %1, %0, %cst {dimension_numbers = #tpu.dot_dimension_numbers<[1], [1], [0], [0], [0, 0, 1, 0], [], []>} : vector<1x32xf32>, vector<8x32xf32>, vector<1x8xf32> -> vector<1x8xf32>
    %c0_3 = arith.constant 0 : index
    %c0_4 = arith.constant 0 : index
    %3 = memref.load %arg3[%c0_3, %c0_4] : memref<1x1xf32, #tpu.memory_space<smem>>
    %4 = vector.broadcast %3 : f32 to vector<1x8xf32>
    %5 = arith.addf %2, %4 : vector<1x8xf32>
    %c0_5 = arith.constant 0 : index
    %c0_6 = arith.constant 0 : index
    %6 = vector.load %arg4[%c0_5, %c0_6] : memref<1x8xf32, #tpu.memory_space<vmem>>, vector<1x8xf32>
    tpu.vector_store %arg4[%c0_5, %c0_6], %5 {strides = array<i32>} : memref<1x8xf32, #tpu.memory_space<vmem>>, vector<1x8xf32>,
    return
  }
  func.func @transform_0(%arg0: i32) -> (i32, i32) {
    %c0_i32 = arith.constant 0 : i32
    %c0_i32_0 = arith.constant 0 : i32
    return %arg0, %c0_i32 : i32, i32
  }
  func.func @transform_1(%arg0: i32) -> (i32, i32) {
    %c0_i32 = arith.constant 0 : i32
    %c0_i32_0 = arith.constant 0 : i32
    %c0_i32_1 = arith.constant 0 : i32
    return %c0_i32, %c0_i32_0 : i32, i32
  }
  func.func @transform_2(%arg0: i32) -> (i32, i32) {
    %c0_i32 = arith.constant 0 : i32
    %c0_i32_0 = arith.constant 0 : i32
    %c0_i32_1 = arith.constant 0 : i32
    return %c0_i32, %c0_i32_0 : i32, i32
  }
  func.func @transform_3(%arg0: i32) -> (i32, i32) {
    %c0_i32 = arith.constant 0 : i32
    %c0_i32_0 = arith.constant 0 : i32
    return %c0_i32, %arg0 : i32, i32
  }
}

</mosaic_0001>

<llo_original>
// kernel: tpu_custom_call.1
$region0: #{tpu_custom_call.1}
  #allocation0 [shape = 'u32[]', space=smem, size = 0x4, offset = 0x4, fixed_abs, tag = 'smem constant byte address 0x4 - core index']
  #allocation1 [shape = 'u32[72,128]{1,0:T(1,128)}', space=vmem, size = 0x9000, scoped, tag = 'internal scratch']
  #allocation2 [shape = 'f32[1,1]{1,0:T(1,128)S(6)}', space=smem, size = 0x200, scoped, tag = 'scoped memory for tpu_custom_call.1']
  %s0 = inlined_call_operand.hbm [shape: f32[8,32], index: 0, kind: input, shape index: {}]
  %s1 = inlined_call_operand.vmem [shape: f32[1,32], index: 1, kind: input, shape index: {}]
  %s2 = inlined_call_operand.<no memory space> [shape: f32[1,1], index: 2, kind: input, shape index: {}]
  %s3 = inlined_call_operand.hbm [shape: f32[1,8], index: 3, kind: output, shape index: {}]
  %s4 = sld [smem:[#allocation0]]
  $region26: #{tpu_custom_call.1} parent=0
    _
  %s6 = ssub.s32 1, %s4
  %s7 = scalar_select 0, %s6, %s4
  %8 = sst [smem:[#allocation2]] %s2
  $region1: #{tpu_custom_call.1} parent=0
    #allocation3 [shape = 'u8[4096]{0}', space=vmem, size = 0x1000, scoped, tag = 'input window, operand 0, single buffered']
    #allocation4 [shape = 's32[1]{0}', space=sflag, size = 0x4, scoped, tag = 'scoped memory for tpu_custom_call.1']
    #allocation5 [shape = 's32[1]{0}', space=sflag, size = 0x4, scoped, tag = 'scoped memory for tpu_custom_call.1']
    #allocation6 [shape = 'u8[512]{0}', space=vmem, size = 0x400, scoped, tag = 'output window, operand 0, single buffered']
    %9 = vsyncpa [#allocation4], 0
    %10 = vsyncpa [#allocation5], 0
    // Predicated region
    $region2: #{tpu_custom_call.1} parent=1 // pred_check
      _
    $region3: #{tpu_custom_call.1} parent=1 // pred_check_branch
      %12 = sbr.rel (0) target = $region5
    $region4: #{tpu_custom_call.1} parent=1 // pred_region
      %14 = vsyncadd [#allocation4], 0
      %s16 = sshll.u32 %s0, 4
      %s17 = int_to_ptr.hbm [resolvable:$true] %s16
      %s18 = sshll.u32 [#allocation3], 4
      %s19 = int_to_ptr.vmem [resolvable:$true] %s18
      %21 = dma.hbm_to_vmem [thread:$0]  %s17, 128, %s19, [#allocation4]
    $region5: #{tpu_custom_call.1} parent=1 // pred_fallthru
      _
    // Predicated region
    $region6: #{tpu_custom_call.1} parent=1 // pred_check
      _
    $region7: #{tpu_custom_call.1} parent=1 // pred_check_branch
      %23 = sbr.rel (0) target = $region9
    $region8: #{tpu_custom_call.1} parent=1 // pred_region
      _
    $region9: #{tpu_custom_call.1} parent=1 // pred_fallthru
      _
    // Predicated region
    $region10: #{tpu_custom_call.1} parent=1 // pred_check
      _
    $region11: #{tpu_custom_call.1} parent=1 // pred_check_branch
      %25 = sbr.rel (0) target = $region13
    $region12: #{tpu_custom_call.1} parent=1 // pred_region
      _
    $region13: #{tpu_custom_call.1} parent=1 // pred_fallthru
      _
    // Predicated region
    $region14: #{tpu_custom_call.1} parent=1 // pred_check
      _
    $region15: #{tpu_custom_call.1} parent=1 // pred_check_branch
      %27 = sbr.rel (0) target = $region17
    $region16: #{tpu_custom_call.1} parent=1 // pred_region
      %29 = dma.done [#allocation4], 128
    $region17: #{tpu_custom_call.1} parent=1 // pred_fallthru
      _
    %v30 = vld [vmem:[#allocation3] sm:$0xff]
    %v31 = vld [vmem:[%s1] sm:$0x1]
    %s32 = sld [smem:[#allocation2]]
    %v33 = vstv %s32
    %vm34 = vcmask 261120
    %v36 = vsel %vm34, %v31, 0
    %v39 = vsel %vm34, %v30, 0
    %41 = vmatpush.xpose.msra.mxu0 0.0
    %42 = vmatpush.xpose.msra.mxu0 0.0
    %43 = vmatpush.xpose.msra.mxu0 0.0
    %44 = vmatpush.xpose.msra.mxu0 0.0
    %45 = vmatpush.xpose.msra.mxu0 0.0
    %46 = vmatpush.xpose.msra.mxu0 0.0
    %47 = vmatpush.xpose.msra.mxu0 0.0
    %48 = vmatpush.xpose.msra.mxu0 0.0
    %49 = vmatpush.xpose.msra.mxu0 0.0
    %50 = vmatpush.xpose.msra.mxu0 0.0
    %51 = vmatpush.xpose.msra.mxu0 0.0
    %52 = vmatpush.xpose.msra.mxu0 0.0
    %53 = vmatpush.xpose.msra.mxu0 0.0
    %54 = vmatpush.xpose.msra.mxu0 0.0
    %55 = vmatpush.xpose.msra.mxu0 0.0
    %56 = vmatpush.xpose.msra.mxu0 %v39
    %57 = vmatmul.f32.gmra.mxu0 %v36
    %v58 = vpop.f32.mrf.mxu0
    %v59 = vadd.f32 %v33, %v58
    %60 = vdwg.mxu0
    %vm61 = vcmask 57344
    %62 = vst.msk [vmem:[#allocation6] sm:$0x1] %vm61, %v59
    // Predicated region
    $region18: #{tpu_custom_call.1} parent=1 // pred_check
      _
    $region19: #{tpu_custom_call.1} parent=1 // pred_check_branch
      %64 = sbr.rel (0) target = $region21
    $region20: #{tpu_custom_call.1} parent=1 // pred_region
      %66 = vsyncadd [#allocation5], 0
      %s68 = sshll.u32 [#allocation6], 4
      %s69 = int_to_ptr.vmem [resolvable:$true] %s68
      %s70 = sshll.u32 %s3, 4
      %s71 = int_to_ptr.hbm [resolvable:$true] %s70
      %73 = dma.vmem_to_hbm [thread:$0]  %s69, 16, %s71, [#allocation5]
    $region21: #{tpu_custom_call.1} parent=1 // pred_fallthru
      _
    // Predicated region
    $region22: #{tpu_custom_call.1} parent=1 // pred_check
      _
    $region23: #{tpu_custom_call.1} parent=1 // pred_check_branch
      %75 = sbr.rel (0) target = $region25
    $region24: #{tpu_custom_call.1} parent=1 // pred_region
      %77 = dma.done [#allocation5], 16
    $region25: #{tpu_custom_call.1} parent=1 // pred_fallthru
      _
    %78 = vsyncpa [#allocation4], 1
    %79 = vsyncpa [#allocation5], 1

</llo_original>
